<compile_context>
chip_gen: v7x
topology: tpu7x:2x2x1
jax: 0.10.0
libtpu: 0.0.40
codegen_flags: <defaults>
</compile_context>

<pallas_src>
import functools
import math

import jax
import jax.numpy as jnp
from jax import lax
from jax.experimental import pallas as pl
from jax.experimental.pallas import tpu as pltpu

# ---------------- config (MambaConfig with d_model=32, expand=2) -------------
D_MODEL = 32
EXPAND = 2
D_INNER = EXPAND * D_MODEL                      # 64
D_STATE = 16
D_CONV = 4
DT_RANK = math.ceil(D_MODEL / 16)               # 2
DT_MIN, DT_MAX, DT_INIT_FLOOR = 1e-3, 1e-1, 1e-4
BATCH = 2
SEQLEN = 8
OUT_PAD = 128                                   # lane-dense output width

# ---- packed weight-slab row layout (all rows are 128 lanes wide) -------------
_R_WIN = 0                                      # in_proj.weight.T      (32 rows)
_R_WFUSE = _R_WIN + D_MODEL                     # fused x/dt proj       (64 rows)
_R_WOUT = _R_WFUSE + D_INNER                    # out_proj.weight.T pad (64 rows)
_R_A = _R_WOUT + D_INNER                        # (-exp(A_log)).T tiled (16 rows)
_R_WC = _R_A + D_STATE                          # conv taps tiled        (4 rows)
_R_BCONV = _R_WC + D_CONV                       # conv bias tiled        (1 row)
_R_BDT = _R_BCONV + 1                           # dt bias tiled          (1 row)
_R_D = _R_BDT + 1                               # D tiled                (1 row)
W_ROWS = ((_R_D + 1 + 7) // 8) * 8              # 184 (8-aligned)


# ------------------------------- kernel --------------------------------------
def mamba_block_kernel(x_ref, w_ref, o_ref, *, batch: int, seqlen: int):
    B, L = batch, seqlen
    ED, N, K = D_INNER, D_STATE, D_CONV
    BED = B * ED                                              # 128 lanes

    # ---- static slices of the single packed weight slab (zero-cost views) ----
    w_in = w_ref[_R_WIN:_R_WIN + D_MODEL, :]                  # (32, 128)
    w_f = w_ref[_R_WFUSE:_R_WFUSE + ED, :]                    # (64, 128)
    w_out = w_ref[_R_WOUT:_R_WOUT + ED, :]                    # (64, 128)
    A_t = w_ref[_R_A:_R_A + N, :]                             # (16, 128)
    wc = w_ref[_R_WC:_R_WC + K, :]                            # (4, 128)
    bc = w_ref[_R_BCONV:_R_BCONV + 1, :]                      # (1, 128)
    bdt = w_ref[_R_BDT:_R_BDT + 1, :]                         # (1, 128)
    Dt = w_ref[_R_D:_R_D + 1, :]                              # (1, 128)

    x = x_ref[...].reshape(B * L, D_MODEL)                    # (BL, d_model)

    # ---- in_proj: one MXU dot over every token of every sequence ------------
    xz = jnp.dot(x, w_in, preferred_element_type=jnp.float32)  # (BL, 2*ED)
    xin = xz[:, :ED]
    z = xz[:, ED:]

    # ---- pack batch into lanes: (B*L, ED) -> (L, B*ED) ----------------------
    xp = jnp.concatenate([xin[b * L:(b + 1) * L, :] for b in range(B)], axis=1)

    # ---- causal depthwise conv1d via sublane rolls (XLU) + causal mask ------
    iota_l = lax.broadcasted_iota(jnp.int32, (L, BED), 0)     # hoisted constant
    conv = jnp.broadcast_to(bc, (L, BED))                     # bias, hoisted
    for k in range(K):                                        # K=4, static
        s = K - 1 - k
        if s == 0:
            term = xp
        else:
            rolled = pltpu.roll(xp, shift=s, axis=0)
            term = jnp.where(iota_l >= s, rolled, 0.0)        # zero wrapped rows
        conv = conv + term * wc[k:k + 1, :]
    xs_p = conv * jax.nn.sigmoid(conv)                        # SiLU, (L, B*ED)

    # ---- fused x_proj + dt_proj: ONE (BL,64)@(64,128) dot --------------------
    xs_rows = jnp.concatenate([xs_p[:, b * ED:(b + 1) * ED] for b in range(B)],
                              axis=0)                         # (BL, ED)
    dbc = jnp.dot(xs_rows, w_f, preferred_element_type=jnp.float32)  # (BL, 128)
    dt_pre = dbc[:, :ED]                                      # (BL, ED)
    Bm = dbc[:, ED:ED + N]                                    # (BL, N)
    Cm = dbc[:, ED + N:ED + 2 * N]                            # (BL, N)

    # dt bias + softplus done in the packed layout
    dt_p = jnp.concatenate([dt_pre[b * L:(b + 1) * L, :] for b in range(B)],
                           axis=1)                            # (L, B*ED)
    dt_p = jax.nn.softplus(dt_p + bdt)

    # B, C: (B*L, N) -> (L, N, B*ED), value broadcast across ED lanes per batch
    def pack_bc(m):
        parts = [jnp.broadcast_to(m[b * L:(b + 1) * L, :, None], (L, N, ED))
                 for b in range(B)]
        return jnp.concatenate(parts, axis=2)
    Bm_p = pack_bc(Bm)                                        # (L, N, B*ED)
    Cm_p = pack_bc(Cm)                                        # (L, N, B*ED)

    # ---- discretization, fully lane-dense (128 lanes) ------------------------
    deltaA = jnp.exp(dt_p[:, None, :] * A_t[None, :, :])      # (L, N, B*ED)
    BX = (dt_p * xs_p)[:, None, :] * Bm_p                     # (L, N, B*ED)

    # ---- selective scan: unrolled (L=8), carry (N, B*ED); per-step C-reduce --
    h = jnp.zeros((N, BED), jnp.float32)
    ys = []
    for t in range(L):
        h = deltaA[t] * h + BX[t]
        ys.append(jnp.sum(h * Cm_p[t], axis=0, keepdims=True))  # (1, B*ED), XLU
    y_p = jnp.concatenate(ys, axis=0)                         # (L, B*ED)
    y_p = y_p + Dt * xs_p                                     # + D * x skip

    # ---- unpack, gate, out_proj (lane-dense padded output, unmasked store) --
    y_rows = jnp.concatenate([y_p[:, b * ED:(b + 1) * ED] for b in range(B)],
                             axis=0)                          # (BL, ED)
    zs = z * jax.nn.sigmoid(z)                                # SiLU(z)
    out = jnp.dot(y_rows * zs, w_out, preferred_element_type=jnp.float32)
    o_ref[...] = out.reshape(B, L, OUT_PAD).astype(o_ref.dtype)


# ------------------------ one-time weight preparation --------------------------
def prepare_params(params, batch=BATCH):
    """One-time weight preprocessing + packing into a single (W_ROWS, 128) slab.

    Call ONCE and reuse the result across forward calls (all transposes,
    -exp(A_log), dt/x-proj fusion, tiling and zero-padding happen here, not in
    the per-call wrapper).
    """
    B = batch
    assert B * D_INNER == OUT_PAD, "kernel assumes B*d_inner == 128 lane packing"

    w_in_t = params["w_in"].T.astype(jnp.float32)             # (d_model, 2*ED)
    w_x_t = params["w_x"].T.astype(jnp.float32)               # (ED, R+2N)
    w_dt_t = params["w_dt"].T.astype(jnp.float32)             # (R, ED)

    # fuse dt_proj into x_proj: columns = [dt (64) | B (16) | C (16) | 0 (32)]
    w_dt_fused = w_x_t[:, :DT_RANK] @ w_dt_t                  # (ED, ED)
    w_fused = jnp.concatenate(
        [w_dt_fused, w_x_t[:, DT_RANK:],
         jnp.zeros((D_INNER, OUT_PAD - D_INNER - 2 * D_STATE), jnp.float32)],
        axis=1)                                               # (64, 128)

    w_out_pad = jnp.concatenate(
        [params["w_out"].T.astype(jnp.float32),
         jnp.zeros((D_INNER, OUT_PAD - D_MODEL), jnp.float32)], axis=1)  # (64,128)

    A_tiled = jnp.tile((-jnp.exp(params["A_log"])).T, (1, B))          # (N, B*ED)
    wc_tiled = jnp.tile(params["w_conv"].T, (1, B))                    # (K, B*ED)
    bc_tiled = jnp.tile(params["b_conv"].reshape(1, -1), (1, B))       # (1, B*ED)
    bdt_tiled = jnp.tile(params["b_dt"].reshape(1, -1), (1, B))        # (1, B*ED)
    d_tiled = jnp.tile(params["D"].reshape(1, -1), (1, B))             # (1, B*ED)
    pad = jnp.zeros((W_ROWS - (_R_D + 1), B * D_INNER), jnp.float32)

    w_all = jnp.concatenate(
        [w_in_t, w_fused, w_out_pad, A_tiled, wc_tiled,
         bc_tiled, bdt_tiled, d_tiled, pad], axis=0)          # (184, 128)
    return w_all


# ------------------------------- wrapper --------------------------------------
def mamba_block_forward(x, w_all):
    """x: (B, L, d_model) float32.  w_all: packed slab from prepare_params()."""
    B, L, d_model = x.shape
    fn = pl.pallas_call(
        functools.partial(mamba_block_kernel, batch=B, seqlen=L),
        out_shape=jax.ShapeDtypeStruct((B, L, OUT_PAD), jnp.float32),
        in_specs=[pl.BlockSpec(memory_space=pltpu.MemorySpace.VMEM),
                  pl.BlockSpec(memory_space=pltpu.MemorySpace.VMEM)],
        out_specs=pl.BlockSpec(memory_space=pltpu.MemorySpace.VMEM),
    )
    out_pad = fn(x, w_all)
    # Downstream consumers that accept the lane-dense padded layout can use
    # out_pad directly; strip padding here to match the module's output shape.
    return out_pad[..., :d_model]


# --------------------------- deterministic init --------------------------------
def init_params(key):
    ks = jax.random.split(key, 8)
    bound_in = 1.0 / math.sqrt(D_MODEL)
    w_in = jax.random.uniform(ks[0], (2 * D_INNER, D_MODEL),
                              minval=-bound_in, maxval=bound_in)
    bound_conv = 1.0 / math.sqrt(D_CONV)                   # groups=ED -> fan_in = K
    w_conv = jax.random.uniform(ks[1], (D_INNER, D_CONV),
                                minval=-bound_conv, maxval=bound_conv)
    b_conv = jax.random.uniform(ks[2], (D_INNER,),
                                minval=-bound_conv, maxval=bound_conv)
    bound_x = 1.0 / math.sqrt(D_INNER)
    w_x = jax.random.uniform(ks[3], (DT_RANK + 2 * D_STATE, D_INNER),
                             minval=-bound_x, maxval=bound_x)
    dt_init_std = DT_RANK ** (-0.5) * 1.0
    w_dt = jax.random.uniform(ks[4], (D_INNER, DT_RANK),
                              minval=-dt_init_std, maxval=dt_init_std)
    dt = jnp.exp(jax.random.uniform(ks[5], (D_INNER,))
                 * (math.log(DT_MAX) - math.log(DT_MIN)) + math.log(DT_MIN))
    dt = jnp.maximum(dt, DT_INIT_FLOOR)
    b_dt = dt + jnp.log(-jnp.expm1(-dt))                   # inv softplus
    A_log = jnp.log(jnp.tile(jnp.arange(1, D_STATE + 1, dtype=jnp.float32)[None, :],
                             (D_INNER, 1)))
    D_p = jnp.ones((D_INNER,), jnp.float32)
    w_out = jax.random.uniform(ks[6], (D_MODEL, D_INNER),
                               minval=-bound_x, maxval=bound_x)
    return {"w_in": w_in, "w_conv": w_conv, "b_conv": b_conv, "w_x": w_x,
            "w_dt": w_dt, "b_dt": b_dt, "A_log": A_log, "D": D_p, "w_out": w_out}


# ----------------------------- pure-JAX reference ------------------------------
def ref_forward(x, p):
    B, L, _ = x.shape
    xz = x @ p["w_in"].T
    xin, z = xz[..., :D_INNER], xz[..., D_INNER:]
    xpad = jnp.pad(xin, ((0, 0), (D_CONV - 1, 0), (0, 0)))
    conv = jnp.zeros_like(xin)
    for k in range(D_CONV):
        conv = conv + xpad[:, k:k + L, :] * p["w_conv"][:, k][None, None, :]
    conv = conv + p["b_conv"]
    xs = jax.nn.silu(conv)
    dbc = xs @ p["w_x"].T
    delta_r = dbc[..., :DT_RANK]
    Bm = dbc[..., DT_RANK:DT_RANK + D_STATE]
    Cm = dbc[..., DT_RANK + D_STATE:]
    dt = jax.nn.softplus(delta_r @ p["w_dt"].T + p["b_dt"])
    A = -jnp.exp(p["A_log"])
    deltaA = jnp.exp(dt[..., None] * A)
    BX = (dt * xs)[..., None] * Bm[..., None, :]

    def step(h, inp):
        dA_t, bx_t = inp
        h = dA_t * h + bx_t
        return h, h

    h0 = jnp.zeros((B, D_INNER, D_STATE), jnp.float32)
    _, hs = lax.scan(step, h0, (jnp.swapaxes(deltaA, 0, 1), jnp.swapaxes(BX, 0, 1)))
    hs = jnp.swapaxes(hs, 0, 1)
    y = jnp.sum(hs * Cm[:, :, None, :], axis=-1) + p["D"] * xs
    return (y * jax.nn.silu(z)) @ p["w_out"].T


# ----------------------------------- main ---------------------------------------
if __name__ == "__main__":
    key = jax.random.PRNGKey(0)
    pkey, xkey = jax.random.split(key)
    params = init_params(pkey)
    x = jax.random.normal(xkey, (BATCH, SEQLEN, D_MODEL), dtype=jnp.float32)

    # One-time weight packing (hoisted out of the per-call wrapper).
    w_all = jax.block_until_ready(prepare_params(params, batch=BATCH))

    out = jax.block_until_ready(mamba_block_forward(x, w_all))

    ref = jax.block_until_ready(ref_forward(x, params))
    err = float(jnp.max(jnp.abs(out - ref)))
    assert out.shape == (BATCH, SEQLEN, D_MODEL)
    assert err < 1e-3, f"mismatch vs reference: {err}"
    print("KERNEL_OK")
</pallas_src>

<mosaic_0001>
module attributes {stable_mosaic.version = 11 : i64} {
  func.func @mamba_block_kernel(%arg0: memref<2x8x32xf32, #tpu.memory_space<vmem>>, %arg1: memref<184x128xf32, #tpu.memory_space<vmem>>, %arg2: memref<2x8x128xf32, #tpu.memory_space<vmem>>) attributes {dimension_semantics = [], scalar_prefetch = 0 : i64, scratch_operands = 0 : i64, tpu.core_type = #tpu.core_type<tc>} {
    %c0 = arith.constant 0 : index
    %c0_0 = arith.constant 0 : index
    %0 = vector.load %arg1[%c0, %c0_0] : memref<184x128xf32, #tpu.memory_space<vmem>>, vector<32x128xf32>
    %c32 = arith.constant 32 : index
    %c0_1 = arith.constant 0 : index
    %1 = vector.load %arg1[%c32, %c0_1] : memref<184x128xf32, #tpu.memory_space<vmem>>, vector<64x128xf32>
    %c96 = arith.constant 96 : index
    %c0_2 = arith.constant 0 : index
    %2 = vector.load %arg1[%c96, %c0_2] : memref<184x128xf32, #tpu.memory_space<vmem>>, vector<64x128xf32>
    %c160 = arith.constant 160 : index
    %c0_3 = arith.constant 0 : index
    %3 = vector.load %arg1[%c160, %c0_3] : memref<184x128xf32, #tpu.memory_space<vmem>>, vector<16x128xf32>
    %c176 = arith.constant 176 : index
    %c0_4 = arith.constant 0 : index
    %4 = vector.load %arg1[%c176, %c0_4] : memref<184x128xf32, #tpu.memory_space<vmem>>, vector<4x128xf32>
    %c180 = arith.constant 180 : index
    %c0_5 = arith.constant 0 : index
    %5 = vector.load %arg1[%c180, %c0_5] : memref<184x128xf32, #tpu.memory_space<vmem>>, vector<1x128xf32>
    %c181 = arith.constant 181 : index
    %c0_6 = arith.constant 0 : index
    %6 = vector.load %arg1[%c181, %c0_6] : memref<184x128xf32, #tpu.memory_space<vmem>>, vector<1x128xf32>
    %c182 = arith.constant 182 : index
    %c0_7 = arith.constant 0 : index
    %7 = vector.load %arg1[%c182, %c0_7] : memref<184x128xf32, #tpu.memory_space<vmem>>, vector<1x128xf32>
    %c0_8 = arith.constant 0 : index
    %c0_9 = arith.constant 0 : index
    %c0_10 = arith.constant 0 : index
    %8 = vector.load %arg0[%c0_8, %c0_9, %c0_10] : memref<2x8x32xf32, #tpu.memory_space<vmem>>, vector<2x8x32xf32>
    %9 = vector.shape_cast %8 : vector<2x8x32xf32> to vector<16x32xf32>
    %cst = arith.constant dense<0.000000e+00> : vector<16x128xf32>
    %10 = tpu.matmul %9, %0, %cst {dimension_numbers = #tpu.dot_dimension_numbers<[1], [0], [0], [1], [0, 0, 1, 1], [], []>} : vector<16x32xf32>, vector<32x128xf32>, vector<16x128xf32> -> vector<16x128xf32>
    %11 = vector.extract_strided_slice %10 {offsets = [0, 0], sizes = [16, 64], strides = [1, 1]} : vector<16x128xf32> to vector<16x64xf32>
    %12 = vector.extract_strided_slice %10 {offsets = [0, 64], sizes = [16, 64], strides = [1, 1]} : vector<16x128xf32> to vector<16x64xf32>
    %13 = vector.extract_strided_slice %11 {offsets = [0, 0], sizes = [8, 64], strides = [1, 1]} : vector<16x64xf32> to vector<8x64xf32>
    %14 = vector.extract_strided_slice %11 {offsets = [8, 0], sizes = [8, 64], strides = [1, 1]} : vector<16x64xf32> to vector<8x64xf32>
    %15 = tpu.concatenate %13, %14 in 1 : vector<8x64xf32>, vector<8x64xf32> -> vector<8x128xf32>
    %16 = tpu.iota {dimensions = array<i32: 0>} : vector<8x128xi32>
    %17 = vector.shape_cast %5 : vector<1x128xf32> to vector<1x128xf32>
    %18 = vector.broadcast %17 : vector<1x128xf32> to vector<8x128xf32>
    %c3_i32 = arith.constant 3 : i32
    %19 = tpu.dynamic_rotate %15 by %c3_i32 dim 0 : vector<8x128xf32>, i32 -> vector<8x128xf32>
    %c3_i32_11 = arith.constant 3 : i32
    %20 = vector.broadcast %c3_i32_11 : i32 to vector<8x128xi32>
    %21 = arith.cmpi sge, %16, %20 : vector<8x128xi32>
    %cst_12 = arith.constant 0.000000e+00 : f32
    %22 = vector.broadcast %cst_12 : f32 to vector<8x128xf32>
    %23 = arith.select %21, %19, %22 : vector<8x128xi1>, vector<8x128xf32>
    %24 = vector.extract_strided_slice %4 {offsets = [0, 0], sizes = [1, 128], strides = [1, 1]} : vector<4x128xf32> to vector<1x128xf32>
    %25 = vector.broadcast %24 : vector<1x128xf32> to vector<8x128xf32>
    %26 = arith.mulf %23, %25 : vector<8x128xf32>
    %27 = arith.addf %18, %26 : vector<8x128xf32>
    %c2_i32 = arith.constant 2 : i32
    %28 = tpu.dynamic_rotate %15 by %c2_i32 dim 0 : vector<8x128xf32>, i32 -> vector<8x128xf32>
    %c2_i32_13 = arith.constant 2 : i32
    %29 = vector.broadcast %c2_i32_13 : i32 to vector<8x128xi32>
    %30 = arith.cmpi sge, %16, %29 : vector<8x128xi32>
    %cst_14 = arith.constant 0.000000e+00 : f32
    %31 = vector.broadcast %cst_14 : f32 to vector<8x128xf32>
    %32 = arith.select %30, %28, %31 : vector<8x128xi1>, vector<8x128xf32>
    %33 = vector.extract_strided_slice %4 {offsets = [1, 0], sizes = [1, 128], strides = [1, 1]} : vector<4x128xf32> to vector<1x128xf32>
    %34 = vector.broadcast %33 : vector<1x128xf32> to vector<8x128xf32>
    %35 = arith.mulf %32, %34 : vector<8x128xf32>
    %36 = arith.addf %27, %35 : vector<8x128xf32>
    %c1_i32 = arith.constant 1 : i32
    %37 = tpu.dynamic_rotate %15 by %c1_i32 dim 0 : vector<8x128xf32>, i32 -> vector<8x128xf32>
    %c1_i32_15 = arith.constant 1 : i32
    %38 = vector.broadcast %c1_i32_15 : i32 to vector<8x128xi32>
    %39 = arith.cmpi sge, %16, %38 : vector<8x128xi32>
    %cst_16 = arith.constant 0.000000e+00 : f32
    %40 = vector.broadcast %cst_16 : f32 to vector<8x128xf32>
    %41 = arith.select %39, %37, %40 : vector<8x128xi1>, vector<8x128xf32>
    %42 = vector.extract_strided_slice %4 {offsets = [2, 0], sizes = [1, 128], strides = [1, 1]} : vector<4x128xf32> to vector<1x128xf32>
    %43 = vector.broadcast %42 : vector<1x128xf32> to vector<8x128xf32>
    %44 = arith.mulf %41, %43 : vector<8x128xf32>
    %45 = arith.addf %36, %44 : vector<8x128xf32>
    %46 = vector.extract_strided_slice %4 {offsets = [3, 0], sizes = [1, 128], strides = [1, 1]} : vector<4x128xf32> to vector<1x128xf32>
    %47 = vector.broadcast %46 : vector<1x128xf32> to vector<8x128xf32>
    %48 = arith.mulf %15, %47 : vector<8x128xf32>
    %49 = arith.addf %45, %48 : vector<8x128xf32>
    %50 = arith.negf %49 : vector<8x128xf32>
    %51 = math.exp %50 : vector<8x128xf32>
    %cst_17 = arith.constant 1.000000e+00 : f32
    %52 = vector.broadcast %cst_17 : f32 to vector<8x128xf32>
    %53 = arith.addf %52, %51 : vector<8x128xf32>
    %54 = arith.divf %52, %53 : vector<8x128xf32>
    %55 = arith.mulf %49, %54 : vector<8x128xf32>
    %56 = vector.extract_strided_slice %55 {offsets = [0, 0], sizes = [8, 64], strides = [1, 1]} : vector<8x128xf32> to vector<8x64xf32>
    %57 = vector.extract_strided_slice %55 {offsets = [0, 64], sizes = [8, 64], strides = [1, 1]} : vector<8x128xf32> to vector<8x64xf32>
    %58 = tpu.concatenate %56, %57 in 0 : vector<8x64xf32>, vector<8x64xf32> -> vector<16x64xf32>
    %cst_18 = arith.constant dense<0.000000e+00> : vector<16x128xf32>
    %59 = tpu.matmul %58, %1, %cst_18 {dimension_numbers = #tpu.dot_dimension_numbers<[1], [0], [0], [1], [0, 0, 1, 1], [], []>} : vector<16x64xf32>, vector<64x128xf32>, vector<16x128xf32> -> vector<16x128xf32>
    %60 = vector.extract_strided_slice %59 {offsets = [0, 0], sizes = [16, 64], strides = [1, 1]} : vector<16x128xf32> to vector<16x64xf32>
    %61 = vector.extract_strided_slice %59 {offsets = [0, 64], sizes = [16, 16], strides = [1, 1]} : vector<16x128xf32> to vector<16x16xf32>
    %62 = vector.extract_strided_slice %59 {offsets = [0, 80], sizes = [16, 16], strides = [1, 1]} : vector<16x128xf32> to vector<16x16xf32>
    %63 = vector.extract_strided_slice %60 {offsets = [0, 0], sizes = [8, 64], strides = [1, 1]} : vector<16x64xf32> to vector<8x64xf32>
    %64 = vector.extract_strided_slice %60 {offsets = [8, 0], sizes = [8, 64], strides = [1, 1]} : vector<16x64xf32> to vector<8x64xf32>
    %65 = tpu.concatenate %63, %64 in 1 : vector<8x64xf32>, vector<8x64xf32> -> vector<8x128xf32>
    %66 = vector.broadcast %6 : vector<1x128xf32> to vector<8x128xf32>
    %67 = arith.addf %65, %66 : vector<8x128xf32>
    %cst_19 = arith.constant 0.000000e+00 : f32
    %68 = vector.broadcast %cst_19 : f32 to vector<8x128xf32>
    %69 = arith.maximumf %67, %68 : vector<8x128xf32>
    %70 = vector.broadcast %cst_19 : f32 to vector<8x128xf32>
    %71 = arith.subf %67, %70 : vector<8x128xf32>
    %72 = arith.cmpf one, %71, %71 : vector<8x128xf32>
    %73 = vector.broadcast %cst_19 : f32 to vector<8x128xf32>
    %74 = arith.addf %67, %73 : vector<8x128xf32>
    %75 = math.absf %71 : vector<8x128xf32>
    %cst_20 = arith.constant 0.000000e+00 : f32
    %76 = vector.broadcast %cst_20 : f32 to vector<8x128xf32>
    %77 = arith.subf %76, %75 : vector<8x128xf32>
    %78 = math.exp %77 : vector<8x128xf32>
    %79 = math.log1p %78 : vector<8x128xf32>
    %80 = arith.addf %69, %79 : vector<8x128xf32>
    %81 = arith.select %72, %74, %80 : vector<8x128xi1>, vector<8x128xf32>
    %82 = vector.extract_strided_slice %61 {offsets = [0, 0], sizes = [8, 16], strides = [1, 1]} : vector<16x16xf32> to vector<8x16xf32>
    %83 = vector.shape_cast %82 : vector<8x16xf32> to vector<8x16x1xf32>
    %84 = vector.shape_cast %83 : vector<8x16x1xf32> to vector<8x16x1xf32>
    %85 = vector.broadcast %84 : vector<8x16x1xf32> to vector<8x16x64xf32>
    %86 = vector.extract_strided_slice %61 {offsets = [8, 0], sizes = [8, 16], strides = [1, 1]} : vector<16x16xf32> to vector<8x16xf32>
    %87 = vector.shape_cast %86 : vector<8x16xf32> to vector<8x16x1xf32>
    %88 = vector.shape_cast %87 : vector<8x16x1xf32> to vector<8x16x1xf32>
    %89 = vector.broadcast %88 : vector<8x16x1xf32> to vector<8x16x64xf32>
    %90 = tpu.concatenate %85, %89 in 2 : vector<8x16x64xf32>, vector<8x16x64xf32> -> vector<8x16x128xf32>
    %91 = vector.extract_strided_slice %62 {offsets = [0, 0], sizes = [8, 16], strides = [1, 1]} : vector<16x16xf32> to vector<8x16xf32>
    %92 = vector.shape_cast %91 : vector<8x16xf32> to vector<8x16x1xf32>
    %93 = vector.shape_cast %92 : vector<8x16x1xf32> to vector<8x16x1xf32>
    %94 = vector.broadcast %93 : vector<8x16x1xf32> to vector<8x16x64xf32>
    %95 = vector.extract_strided_slice %62 {offsets = [8, 0], sizes = [8, 16], strides = [1, 1]} : vector<16x16xf32> to vector<8x16xf32>
    %96 = vector.shape_cast %95 : vector<8x16xf32> to vector<8x16x1xf32>
    %97 = vector.shape_cast %96 : vector<8x16x1xf32> to vector<8x16x1xf32>
    %98 = vector.broadcast %97 : vector<8x16x1xf32> to vector<8x16x64xf32>
    %99 = tpu.concatenate %94, %98 in 2 : vector<8x16x64xf32>, vector<8x16x64xf32> -> vector<8x16x128xf32>
    %100 = vector.shape_cast %81 : vector<8x128xf32> to vector<8x1x128xf32>
    %101 = vector.shape_cast %3 : vector<16x128xf32> to vector<1x16x128xf32>
    %102 = vector.broadcast %100 : vector<8x1x128xf32> to vector<8x16x128xf32>
    %103 = vector.broadcast %101 : vector<1x16x128xf32> to vector<8x16x128xf32>
    %104 = arith.mulf %102, %103 : vector<8x16x128xf32>
    %105 = math.exp %104 : vector<8x16x128xf32>
    %106 = arith.mulf %81, %55 : vector<8x128xf32>
    %107 = vector.shape_cast %106 : vector<8x128xf32> to vector<8x1x128xf32>
    %108 = vector.broadcast %107 : vector<8x1x128xf32> to vector<8x16x128xf32>
    %109 = arith.mulf %108, %90 : vector<8x16x128xf32>
    %cst_21 = arith.constant 0.000000e+00 : f32
    %110 = vector.broadcast %cst_21 : f32 to vector<16x128xf32>
    %111 = vector.extract_strided_slice %105 {offsets = [0, 0, 0], sizes = [1, 16, 128], strides = [1, 1, 1]} : vector<8x16x128xf32> to vector<1x16x128xf32>
    %112 = vector.shape_cast %111 : vector<1x16x128xf32> to vector<16x128xf32>
    %113 = arith.mulf %112, %110 : vector<16x128xf32>
    %114 = vector.extract_strided_slice %109 {offsets = [0, 0, 0], sizes = [1, 16, 128], strides = [1, 1, 1]} : vector<8x16x128xf32> to vector<1x16x128xf32>
    %115 = vector.shape_cast %114 : vector<1x16x128xf32> to vector<16x128xf32>
    %116 = arith.addf %113, %115 : vector<16x128xf32>
    %117 = vector.extract_strided_slice %99 {offsets = [0, 0, 0], sizes = [1, 16, 128], strides = [1, 1, 1]} : vector<8x16x128xf32> to vector<1x16x128xf32>
    %118 = vector.shape_cast %117 : vector<1x16x128xf32> to vector<16x128xf32>
    %119 = arith.mulf %116, %118 : vector<16x128xf32>
    %cst_22 = arith.constant dense<0.000000e+00> : vector<128xf32>
    %120 = vector.multi_reduction <add>, %119, %cst_22 [0] : vector<16x128xf32> to vector<128xf32>
    %121 = vector.shape_cast %120 : vector<128xf32> to vector<1x128xf32>
    %122 = vector.extract_strided_slice %105 {offsets = [1, 0, 0], sizes = [1, 16, 128], strides = [1, 1, 1]} : vector<8x16x128xf32> to vector<1x16x128xf32>
    %123 = vector.shape_cast %122 : vector<1x16x128xf32> to vector<16x128xf32>
    %124 = arith.mulf %123, %116 : vector<16x128xf32>
    %125 = vector.extract_strided_slice %109 {offsets = [1, 0, 0], sizes = [1, 16, 128], strides = [1, 1, 1]} : vector<8x16x128xf32> to vector<1x16x128xf32>
    %126 = vector.shape_cast %125 : vector<1x16x128xf32> to vector<16x128xf32>
    %127 = arith.addf %124, %126 : vector<16x128xf32>
    %128 = vector.extract_strided_slice %99 {offsets = [1, 0, 0], sizes = [1, 16, 128], strides = [1, 1, 1]} : vector<8x16x128xf32> to vector<1x16x128xf32>
    %129 = vector.shape_cast %128 : vector<1x16x128xf32> to vector<16x128xf32>
    %130 = arith.mulf %127, %129 : vector<16x128xf32>
    %cst_23 = arith.constant dense<0.000000e+00> : vector<128xf32>
    %131 = vector.multi_reduction <add>, %130, %cst_23 [0] : vector<16x128xf32> to vector<128xf32>
    %132 = vector.shape_cast %131 : vector<128xf32> to vector<1x128xf32>
    %133 = vector.extract_strided_slice %105 {offsets = [2, 0, 0], sizes = [1, 16, 128], strides = [1, 1, 1]} : vector<8x16x128xf32> to vector<1x16x128xf32>
    %134 = vector.shape_cast %133 : vector<1x16x128xf32> to vector<16x128xf32>
    %135 = arith.mulf %134, %127 : vector<16x128xf32>
    %136 = vector.extract_strided_slice %109 {offsets = [2, 0, 0], sizes = [1, 16, 128], strides = [1, 1, 1]} : vector<8x16x128xf32> to vector<1x16x128xf32>
    %137 = vector.shape_cast %136 : vector<1x16x128xf32> to vector<16x128xf32>
    %138 = arith.addf %135, %137 : vector<16x128xf32>
    %139 = vector.extract_strided_slice %99 {offsets = [2, 0, 0], sizes = [1, 16, 128], strides = [1, 1, 1]} : vector<8x16x128xf32> to vector<1x16x128xf32>
    %140 = vector.shape_cast %139 : vector<1x16x128xf32> to vector<16x128xf32>
    %141 = arith.mulf %138, %140 : vector<16x128xf32>
    %cst_24 = arith.constant dense<0.000000e+00> : vector<128xf32>
    %142 = vector.multi_reduction <add>, %141, %cst_24 [0] : vector<16x128xf32> to vector<128xf32>
    %143 = vector.shape_cast %142 : vector<128xf32> to vector<1x128xf32>
    %144 = vector.extract_strided_slice %105 {offsets = [3, 0, 0], sizes = [1, 16, 128], strides = [1, 1, 1]} : vector<8x16x128xf32> to vector<1x16x128xf32>
    %145 = vector.shape_cast %144 : vector<1x16x128xf32> to vector<16x128xf32>
    %146 = arith.mulf %145, %138 : vector<16x128xf32>
    %147 = vector.extract_strided_slice %109 {offsets = [3, 0, 0], sizes = [1, 16, 128], strides = [1, 1, 1]} : vector<8x16x128xf32> to vector<1x16x128xf32>
    %148 = vector.shape_cast %147 : vector<1x16x128xf32> to vector<16x128xf32>
    %149 = arith.addf %146, %148 : vector<16x128xf32>
    %150 = vector.extract_strided_slice %99 {offsets = [3, 0, 0], sizes = [1, 16, 128], strides = [1, 1, 1]} : vector<8x16x128xf32> to vector<1x16x128xf32>
    %151 = vector.shape_cast %150 : vector<1x16x128xf32> to vector<16x128xf32>
    %152 = arith.mulf %149, %151 : vector<16x128xf32>
    %cst_25 = arith.constant dense<0.000000e+00> : vector<128xf32>
    %153 = vector.multi_reduction <add>, %152, %cst_25 [0] : vector<16x128xf32> to vector<128xf32>
    %154 = vector.shape_cast %153 : vector<128xf32> to vector<1x128xf32>
    %155 = vector.extract_strided_slice %105 {offsets = [4, 0, 0], sizes = [1, 16, 128], strides = [1, 1, 1]} : vector<8x16x128xf32> to vector<1x16x128xf32>
    %156 = vector.shape_cast %155 : vector<1x16x128xf32> to vector<16x128xf32>
    %157 = arith.mulf %156, %149 : vector<16x128xf32>
    %158 = vector.extract_strided_slice %109 {offsets = [4, 0, 0], sizes = [1, 16, 128], strides = [1, 1, 1]} : vector<8x16x128xf32> to vector<1x16x128xf32>
    %159 = vector.shape_cast %158 : vector<1x16x128xf32> to vector<16x128xf32>
    %160 = arith.addf %157, %159 : vector<16x128xf32>
    %161 = vector.extract_strided_slice %99 {offsets = [4, 0, 0], sizes = [1, 16, 128], strides = [1, 1, 1]} : vector<8x16x128xf32> to vector<1x16x128xf32>
    %162 = vector.shape_cast %161 : vector<1x16x128xf32> to vector<16x128xf32>
    %163 = arith.mulf %160, %162 : vector<16x128xf32>
    %cst_26 = arith.constant dense<0.000000e+00> : vector<128xf32>
    %164 = vector.multi_reduction <add>, %163, %cst_26 [0] : vector<16x128xf32> to vector<128xf32>
    %165 = vector.shape_cast %164 : vector<128xf32> to vector<1x128xf32>
    %166 = vector.extract_strided_slice %105 {offsets = [5, 0, 0], sizes = [1, 16, 128], strides = [1, 1, 1]} : vector<8x16x128xf32> to vector<1x16x128xf32>
    %167 = vector.shape_cast %166 : vector<1x16x128xf32> to vector<16x128xf32>
    %168 = arith.mulf %167, %160 : vector<16x128xf32>
    %169 = vector.extract_strided_slice %109 {offsets = [5, 0, 0], sizes = [1, 16, 128], strides = [1, 1, 1]} : vector<8x16x128xf32> to vector<1x16x128xf32>
    %170 = vector.shape_cast %169 : vector<1x16x128xf32> to vector<16x128xf32>
    %171 = arith.addf %168, %170 : vector<16x128xf32>
    %172 = vector.extract_strided_slice %99 {offsets = [5, 0, 0], sizes = [1, 16, 128], strides = [1, 1, 1]} : vector<8x16x128xf32> to vector<1x16x128xf32>
    %173 = vector.shape_cast %172 : vector<1x16x128xf32> to vector<16x128xf32>
    %174 = arith.mulf %171, %173 : vector<16x128xf32>
    %cst_27 = arith.constant dense<0.000000e+00> : vector<128xf32>
    %175 = vector.multi_reduction <add>, %174, %cst_27 [0] : vector<16x128xf32> to vector<128xf32>
    %176 = vector.shape_cast %175 : vector<128xf32> to vector<1x128xf32>
    %177 = vector.extract_strided_slice %105 {offsets = [6, 0, 0], sizes = [1, 16, 128], strides = [1, 1, 1]} : vector<8x16x128xf32> to vector<1x16x128xf32>
    %178 = vector.shape_cast %177 : vector<1x16x128xf32> to vector<16x128xf32>
    %179 = arith.mulf %178, %171 : vector<16x128xf32>
    %180 = vector.extract_strided_slice %109 {offsets = [6, 0, 0], sizes = [1, 16, 128], strides = [1, 1, 1]} : vector<8x16x128xf32> to vector<1x16x128xf32>
    %181 = vector.shape_cast %180 : vector<1x16x128xf32> to vector<16x128xf32>
    %182 = arith.addf %179, %181 : vector<16x128xf32>
    %183 = vector.extract_strided_slice %99 {offsets = [6, 0, 0], sizes = [1, 16, 128], strides = [1, 1, 1]} : vector<8x16x128xf32> to vector<1x16x128xf32>
    %184 = vector.shape_cast %183 : vector<1x16x128xf32> to vector<16x128xf32>
    %185 = arith.mulf %182, %184 : vector<16x128xf32>
    %cst_28 = arith.constant dense<0.000000e+00> : vector<128xf32>
    %186 = vector.multi_reduction <add>, %185, %cst_28 [0] : vector<16x128xf32> to vector<128xf32>
    %187 = vector.shape_cast %186 : vector<128xf32> to vector<1x128xf32>
    %188 = vector.extract_strided_slice %105 {offsets = [7, 0, 0], sizes = [1, 16, 128], strides = [1, 1, 1]} : vector<8x16x128xf32> to vector<1x16x128xf32>
    %189 = vector.shape_cast %188 : vector<1x16x128xf32> to vector<16x128xf32>
    %190 = arith.mulf %189, %182 : vector<16x128xf32>
    %191 = vector.extract_strided_slice %109 {offsets = [7, 0, 0], sizes = [1, 16, 128], strides = [1, 1, 1]} : vector<8x16x128xf32> to vector<1x16x128xf32>
    %192 = vector.shape_cast %191 : vector<1x16x128xf32> to vector<16x128xf32>
    %193 = arith.addf %190, %192 : vector<16x128xf32>
    %194 = vector.extract_strided_slice %99 {offsets = [7, 0, 0], sizes = [1, 16, 128], strides = [1, 1, 1]} : vector<8x16x128xf32> to vector<1x16x128xf32>
    %195 = vector.shape_cast %194 : vector<1x16x128xf32> to vector<16x128xf32>
    %196 = arith.mulf %193, %195 : vector<16x128xf32>
    %cst_29 = arith.constant dense<0.000000e+00> : vector<128xf32>
    %197 = vector.multi_reduction <add>, %196, %cst_29 [0] : vector<16x128xf32> to vector<128xf32>
    %198 = vector.shape_cast %197 : vector<128xf32> to vector<1x128xf32>
    %199 = tpu.concatenate %121, %132, %143, %154, %165, %176, %187, %198 in 0 : vector<1x128xf32>, vector<1x128xf32>, vector<1x128xf32>, vector<1x128xf32>, vector<1x128xf32>, vector<1x128xf32>, vector<1x128xf32>, vector<1x128xf32> -> vector<8x128xf32>
    %200 = vector.broadcast %7 : vector<1x128xf32> to vector<8x128xf32>
    %201 = arith.mulf %200, %55 : vector<8x128xf32>
    %202 = arith.addf %199, %201 : vector<8x128xf32>
    %203 = vector.extract_strided_slice %202 {offsets = [0, 0], sizes = [8, 64], strides = [1, 1]} : vector<8x128xf32> to vector<8x64xf32>
    %204 = vector.extract_strided_slice %202 {offsets = [0, 64], sizes = [8, 64], strides = [1, 1]} : vector<8x128xf32> to vector<8x64xf32>
    %205 = tpu.concatenate %203, %204 in 0 : vector<8x64xf32>, vector<8x64xf32> -> vector<16x64xf32>
    %206 = arith.negf %12 : vector<16x64xf32>
    %207 = math.exp %206 : vector<16x64xf32>
    %cst_30 = arith.constant 1.000000e+00 : f32
    %208 = vector.broadcast %cst_30 : f32 to vector<16x64xf32>
    %209 = arith.addf %208, %207 : vector<16x64xf32>
    %210 = arith.divf %208, %209 : vector<16x64xf32>
    %211 = arith.mulf %12, %210 : vector<16x64xf32>
    %212 = arith.mulf %205, %211 : vector<16x64xf32>
    %cst_31 = arith.constant dense<0.000000e+00> : vector<16x128xf32>
    %213 = tpu.matmul %212, %2, %cst_31 {dimension_numbers = #tpu.dot_dimension_numbers<[1], [0], [0], [1], [0, 0, 1, 1], [], []>} : vector<16x64xf32>, vector<64x128xf32>, vector<16x128xf32> -> vector<16x128xf32>
    %214 = vector.shape_cast %213 : vector<16x128xf32> to vector<2x8x128xf32>
    %c0_32 = arith.constant 0 : index
    %c0_33 = arith.constant 0 : index
    %c0_34 = arith.constant 0 : index
    %215 = vector.load %arg2[%c0_32, %c0_33, %c0_34] : memref<2x8x128xf32, #tpu.memory_space<vmem>>, vector<2x8x128xf32>
    tpu.vector_store %arg2[%c0_32, %c0_33, %c0_34], %214 {strides = array<i32>} : memref<2x8x128xf32, #tpu.memory_space<vmem>>, vector<2x8x128xf32>,
    return
  }
}

</mosaic_0001>

<llo_original>
// kernel: tpu_custom_call.1
$region0: #{tpu_custom_call.1}
  #allocation0 [shape = 'u32[]', space=smem, size = 0x4, offset = 0x4, fixed_abs, tag = 'smem constant byte address 0x4 - core index']
  #allocation1 [shape = 'u32[144,128]{1,0:T(1,128)}', space=vmem, size = 0x12000, scoped, tag = 'internal scratch']
  %s0 = inlined_call_operand.hbm [shape: f32[2,8,32], index: 0, kind: input, shape index: {}]
  %s1 = inlined_call_operand.hbm [shape: f32[184,128], index: 1, kind: input, shape index: {}]
  %s2 = inlined_call_operand.hbm [shape: f32[2,8,128], index: 2, kind: output, shape index: {}]
  %s3 = sld [smem:[#allocation0]]
  $region26: #{tpu_custom_call.1} parent=0
    _
  %s5 = ssub.s32 1, %s3
  %s6 = scalar_select 0, %s5, %s3
  $region1: #{tpu_custom_call.1} parent=0
    #allocation2 [shape = 'u8[8192]{0}', space=vmem, size = 0x2000, scoped, tag = 'input window, operand 0, single buffered']
    #allocation3 [shape = 's32[1]{0}', space=sflag, size = 0x4, scoped, tag = 'scoped memory for tpu_custom_call.1']
    #allocation4 [shape = 's32[1]{0}', space=sflag, size = 0x4, scoped, tag = 'scoped memory for tpu_custom_call.1']
    #allocation5 [shape = 'u8[94208]{0}', space=vmem, size = 0x17000, scoped, tag = 'input window, operand 1, single buffered']
    #allocation6 [shape = 's32[1]{0}', space=sflag, size = 0x4, scoped, tag = 'scoped memory for tpu_custom_call.1']
    #allocation7 [shape = 'u8[8192]{0}', space=vmem, size = 0x2000, scoped, tag = 'output window, operand 0, single buffered']
    %7 = vsyncpa [#allocation3], 0
    %8 = vsyncpa [#allocation6], 0
    %9 = vsyncpa [#allocation4], 0
    // Predicated region
    $region2: #{tpu_custom_call.1} parent=1 // pred_check
      _
    $region3: #{tpu_custom_call.1} parent=1 // pred_check_branch
      %11 = sbr.rel (0) target = $region5
    $region4: #{tpu_custom_call.1} parent=1 // pred_region
      %s13 = ssub.s32 256, 256
      %14 = vsyncadd [#allocation3], %s13
      %s15 = sshll.u32 [#allocation2], 4
      %s16 = int_to_ptr.vmem [resolvable:$true] %s15
      %21 = dma.hbm_to_vmem [thread:$0]  %s0, 256, %s16, [#allocation3], 128, 128, 8
    $region5: #{tpu_custom_call.1} parent=1 // pred_fallthru
      _
    // Predicated region
    $region6: #{tpu_custom_call.1} parent=1 // pred_check
      _
    $region7: #{tpu_custom_call.1} parent=1 // pred_check_branch
      %23 = sbr.rel (0) target = $region9
    $region8: #{tpu_custom_call.1} parent=1 // pred_region
      %s25 = ssub.s32 2944, 2944
      %26 = vsyncadd [#allocation6], %s25
      %s27 = sshll.u32 [#allocation5], 4
      %s28 = int_to_ptr.vmem [resolvable:$true] %s27
      %33 = dma.hbm_to_vmem [thread:$0]  %s1, 2944, %s28, [#allocation6], 128, 128, 8
    $region9: #{tpu_custom_call.1} parent=1 // pred_fallthru
      _
    // Predicated region
    $region10: #{tpu_custom_call.1} parent=1 // pred_check
      _
    $region11: #{tpu_custom_call.1} parent=1 // pred_check_branch
      %35 = sbr.rel (0) target = $region13
    $region12: #{tpu_custom_call.1} parent=1 // pred_region
      %36 = dma.done [#allocation3], 256
    $region13: #{tpu_custom_call.1} parent=1 // pred_fallthru
      _
    // Predicated region
    $region14: #{tpu_custom_call.1} parent=1 // pred_check
      _
    $region15: #{tpu_custom_call.1} parent=1 // pred_check_branch
      %38 = sbr.rel (0) target = $region17
    $region16: #{tpu_custom_call.1} parent=1 // pred_region
      %39 = dma.done [#allocation6], 2944
    $region17: #{tpu_custom_call.1} parent=1 // pred_fallthru
      _
    %v40 = vld [vmem:[#allocation5] sm:$0xff]
    %v41 = vld [vmem:[#allocation5 + $0x8] sm:$0xff]
    %v42 = vld [vmem:[#allocation5 + $0x10] sm:$0xff]
    %v43 = vld [vmem:[#allocation5 + $0x18] sm:$0xff]
    %v44 = vld [vmem:[#allocation5 + $0x20] sm:$0xff]
    %v45 = vld [vmem:[#allocation5 + $0x28] sm:$0xff]
    %v46 = vld [vmem:[#allocation5 + $0x30] sm:$0xff]
    %v47 = vld [vmem:[#allocation5 + $0x38] sm:$0xff]
    %v48 = vld [vmem:[#allocation5 + $0x40] sm:$0xff]
    %v49 = vld [vmem:[#allocation5 + $0x48] sm:$0xff]
    %v50 = vld [vmem:[#allocation5 + $0x50] sm:$0xff]
    %v51 = vld [vmem:[#allocation5 + $0x58] sm:$0xff]
    %v52 = vld [vmem:[#allocation5 + $0x60] sm:$0xff]
    %v53 = vld [vmem:[#allocation5 + $0x68] sm:$0xff]
    %v54 = vld [vmem:[#allocation5 + $0x70] sm:$0xff]
    %v55 = vld [vmem:[#allocation5 + $0x78] sm:$0xff]
    %v56 = vld [vmem:[#allocation5 + $0x80] sm:$0xff]
    %v57 = vld [vmem:[#allocation5 + $0x88] sm:$0xff]
    %v58 = vld [vmem:[#allocation5 + $0x90] sm:$0xff]
    %v59 = vld [vmem:[#allocation5 + $0x98] sm:$0xff]
    %v60 = vld [vmem:[#allocation5 + $0xa0] sm:$0xff]
    %v61 = vld [vmem:[#allocation5 + $0xa8] sm:$0xff]
    %v62 = vld [vmem:[#allocation5 + $0xb0] sm:$0xf]
    %v63 = vld [vmem:[#allocation5 + $0xb4] sm:$0x1]
    %v64 = vld [vmem:[#allocation5 + $0xb5] sm:$0x1]
    %v65 = vld [vmem:[#allocation5 + $0xb6] sm:$0x1]
    %v66 = vld [vmem:[#allocation2] sm:$0xff]
    %v67 = vld [vmem:[#allocation2 + $0x8] sm:$0xff]
    %vm68 = vcmask 261120
    %v70 = vsel %vm68, %v66, 0
    %v73 = vsel %vm68, %v67, 0
    %75 = vmatprep.subr.mxu0 0.0
    %76 = vmatpush1.msra.mxu0 %v40
    %77 = vmatprep.subr.mxu0 0.0
    %78 = vmatpush1.msra.mxu0 %v41
    %79 = vmatprep.subr.mxu0 0.0
    %80 = vmatpush1.msra.mxu0 %v42
    %81 = vmatprep.subr.mxu0 0.0
    %82 = vmatpush1.msra.mxu0 %v43
    %83 = vmatprep.subr.mxu0 0.0
    %84 = vmatpush1.msra.mxu0 0.0
    %85 = vmatprep.subr.mxu0 0.0
    %86 = vmatpush1.msra.mxu0 0.0
    %87 = vmatprep.subr.mxu0 0.0
    %88 = vmatpush1.msra.mxu0 0.0
    %89 = vmatprep.subr.mxu0 0.0
    %90 = vmatpush1.msra.mxu0 0.0
    %91 = vmatprep.subr.mxu0 0.0
    %92 = vmatpush1.msra.mxu0 0.0
    %93 = vmatprep.subr.mxu0 0.0
    %94 = vmatpush1.msra.mxu0 0.0
    %95 = vmatprep.subr.mxu0 0.0
    %96 = vmatpush1.msra.mxu0 0.0
    %97 = vmatprep.subr.mxu0 0.0
    %98 = vmatpush1.msra.mxu0 0.0
    %99 = vmatprep.subr.mxu0 0.0
    %100 = vmatpush1.msra.mxu0 0.0
    %101 = vmatprep.subr.mxu0 0.0
    %102 = vmatpush1.msra.mxu0 0.0
    %103 = vmatprep.subr.mxu0 0.0
    %104 = vmatpush1.msra.mxu0 0.0
    %105 = vmatprep.subr.mxu0 0.0
    %106 = vmatpush1.msra.mxu0 0.0
    %107 = vmatprep.subr.mxu0 0.0
    %108 = vmatpush1.msra.mxu0 0.0
    %109 = vmatprep.subr.mxu0 0.0
    %110 = vmatpush1.msra.mxu0 0.0
    %111 = vmatprep.subr.mxu0 0.0
    %112 = vmatpush1.msra.mxu0 0.0
    %113 = vmatprep.subr.mxu0 0.0
    %114 = vmatpush1.msra.mxu0 0.0
    %115 = vmatprep.subr.mxu0 0.0
    %116 = vmatpush1.msra.mxu0 0.0
    %117 = vmatprep.subr.mxu0 0.0
    %118 = vmatpush1.msra.mxu0 0.0
    %119 = vmatprep.subr.mxu0 0.0
    %120 = vmatpush1.msra.mxu0 0.0
    %121 = vmatprep.subr.mxu0 0.0
    %122 = vmatpush1.msra.mxu0 0.0
    %123 = vmatprep.subr.mxu0 0.0
    %124 = vmatpush1.msra.mxu0 0.0
    %125 = vmatprep.subr.mxu0 0.0
    %126 = vmatpush1.msra.mxu0 0.0
    %127 = vmatprep.subr.mxu0 0.0
    %128 = vmatpush1.msra.mxu0 0.0
    %129 = vmatprep.subr.mxu0 0.0
    %130 = vmatpush1.msra.mxu0 0.0
    %131 = vmatprep.subr.mxu0 0.0
    %132 = vmatpush1.msra.mxu0 0.0
    %133 = vmatprep.subr.mxu0 0.0
    %134 = vmatpush1.msra.mxu0 0.0
    %135 = vmatprep.subr.mxu0 0.0
    %136 = vmatpush1.msra.mxu0 0.0
    %137 = vmatprep.subr.mxu0 0.0
    %138 = vmatpush1.msra.mxu0 0.0
    %139 = vmatprep.mubr.f32.mxu0 0.0
    %140 = vmatmul.mubr.f32.gmra.mrb[0].mxu0 %v70
    %v141 = vpop.f32.mrb[0].mxu0
    %v142 = vadd.f32 0.0, %v141
    %v143 = vpop.f32.mrb[0].mxu0
    %144 = vmatprep.mubr.f32.mxu0 0.0
    %145 = vmatmul.mubr.f32.gmra.mrb[0].mxu0 %v73
    %v146 = vpop.f32.mrb[0].mxu0
    %v147 = vadd.f32 0.0, %v146
    %v148 = vpop.f32.mrb[0].mxu0
    %149 = vdwg.mxu0
    %151 = vrot.lane.b32.xlu0 %v147, 64
    %v152 = vpop.permute.xlu0 %151
    %vm154 = vcmask 523264
    %v155 = vsel %vm154, %v142, %v152
    %v156 = vlaneseq
    %v157 = vshrl.u32 %v156, 7
    %v158 = vlaneseq
    %v159 = vshrl.u32 %v158, 7
    %v160 = vsub.s32 0, %v159
    %v161 = vrot.slane %v63, %v160
    %v162 = vrot.slane %v155, 5
    %vm163 = vcmp.ge.s32.totalorder %v157, 3
    %v164 = vsel %vm163, %v162, 0.0
    %v165 = vlaneseq
    %v166 = vshrl.u32 %v165, 7
    %v167 = vsub.s32 0, %v166
    %v168 = vrot.slane %v62, %v167
    %v169 = vmul.f32 %v164, %v168
    %v170 = vadd.f32 %v161, %v169
    %v171 = vrot.slane %v155, 6
    %vm172 = vcmp.ge.s32.totalorder %v157, 2
    %v173 = vsel %vm172, %v171, 0.0
    %v174 = vlaneseq
    %v175 = vshrl.u32 %v174, 7
    %v176 = vsub.s32 1, %v175
    %v177 = vrot.slane %v62, %v176
    %v178 = vmul.f32 %v173, %v177
    %v179 = vadd.f32 %v170, %v178
    %v180 = vrot.slane %v155, 7
    %vm181 = vcmp.ge.s32.totalorder %v157, 1
    %v182 = vsel %vm181, %v180, 0.0
    %v183 = vlaneseq
    %v184 = vshrl.u32 %v183, 7
    %v185 = vsub.s32 2, %v184
    %v186 = vrot.slane %v62, %v185
    %v187 = vmul.f32 %v182, %v186
    %v188 = vadd.f32 %v179, %v187
    %v189 = vlaneseq
    %v190 = vshrl.u32 %v189, 7
    %v191 = vsub.s32 3, %v190
    %v192 = vrot.slane %v62, %v191
    %v193 = vmul.f32 %v155, %v192
    %v194 = vadd.f32 %v188, %v193
    %v195 = vxor.u32 %v194, 2147483648
    %v196 = vmul.f32 %v195, 1.442695
    %v197 = vpow.pop %v196
    %v198 = vadd.f32 %v197, 1.0
    %v199 = vrcp.pop %v198
    %v200 = vmul.f32 1.0, %v199
    %v201 = vmul.f32 %v194, %v200
    %203 = vrot.lane.b32.xlu0 %v201, 64
    %v204 = vpop.permute.xlu0 %203
    %v205 = vsel %vm154, %v201, 0
    %v207 = vsel %vm154, %v204, 0
    %209 = vmatprep.subr.mxu0 0.0
    %210 = vmatpush1.msra.mxu0 %v44
    %211 = vmatprep.subr.mxu0 0.0
    %212 = vmatpush1.msra.mxu0 %v45
    %213 = vmatprep.subr.mxu0 0.0
    %214 = vmatpush1.msra.mxu0 %v46
    %215 = vmatprep.subr.mxu0 0.0
    %216 = vmatpush1.msra.mxu0 %v47
    %217 = vmatprep.subr.mxu0 0.0
    %218 = vmatpush1.msra.mxu0 %v48
    %219 = vmatprep.subr.mxu0 0.0
    %220 = vmatpush1.msra.mxu0 %v49
    %221 = vmatprep.subr.mxu0 0.0
    %222 = vmatpush1.msra.mxu0 %v50
    %223 = vmatprep.subr.mxu0 0.0
    %224 = vmatpush1.msra.mxu0 %v51
    %225 = vmatprep.subr.mxu0 0.0
    %226 = vmatpush1.msra.mxu0 0.0
    %227 = vmatprep.subr.mxu0 0.0
    %228 = vmatpush1.msra.mxu0 0.0
    %229 = vmatprep.subr.mxu0 0.0
    %230 = vmatpush1.msra.mxu0 0.0
    %231 = vmatprep.subr.mxu0 0.0
    %232 = vmatpush1.msra.mxu0 0.0
    %233 = vmatprep.subr.mxu0 0.0
    %234 = vmatpush1.msra.mxu0 0.0
    %235 = vmatprep.subr.mxu0 0.0
    %236 = vmatpush1.msra.mxu0 0.0
    %237 = vmatprep.subr.mxu0 0.0
    %238 = vmatpush1.msra.mxu0 0.0
    %239 = vmatprep.subr.mxu0 0.0
    %240 = vmatpush1.msra.mxu0 0.0
    %241 = vmatprep.subr.mxu0 0.0
    %242 = vmatpush1.msra.mxu0 0.0
    %243 = vmatprep.subr.mxu0 0.0
    %244 = vmatpush1.msra.mxu0 0.0
    %245 = vmatprep.subr.mxu0 0.0
    %246 = vmatpush1.msra.mxu0 0.0
    %247 = vmatprep.subr.mxu0 0.0
    %248 = vmatpush1.msra.mxu0 0.0
    %249 = vmatprep.subr.mxu0 0.0
    %250 = vmatpush1.msra.mxu0 0.0
    %251 = vmatprep.subr.mxu0 0.0
    %252 = vmatpush1.msra.mxu0 0.0
    %253 = vmatprep.subr.mxu0 0.0
    %254 = vmatpush1.msra.mxu0 0.0
    %255 = vmatprep.subr.mxu0 0.0
    %256 = vmatpush1.msra.mxu0 0.0
    %257 = vmatprep.subr.mxu0 0.0
    %258 = vmatpush1.msra.mxu0 0.0
    %259 = vmatprep.subr.mxu0 0.0
    %260 = vmatpush1.msra.mxu0 0.0
    %261 = vmatprep.subr.mxu0 0.0
    %262 = vmatpush1.msra.mxu0 0.0
    %263 = vmatprep.subr.mxu0 0.0
    %264 = vmatpush1.msra.mxu0 0.0
    %265 = vmatprep.subr.mxu0 0.0
    %266 = vmatpush1.msra.mxu0 0.0
    %267 = vmatprep.subr.mxu0 0.0
    %268 = vmatpush1.msra.mxu0 0.0
    %269 = vmatprep.subr.mxu0 0.0
    %270 = vmatpush1.msra.mxu0 0.0
    %271 = vmatprep.subr.mxu0 0.0
    %272 = vmatpush1.msra.mxu0 0.0
    %273 = vmatprep.mubr.f32.mxu0 0.0
    %274 = vmatmul.mubr.f32.gmra.mrb[0].mxu0 %v205
    %v275 = vpop.f32.mrb[0].mxu0
    %v276 = vadd.f32 0.0, %v275
    %v277 = vpop.f32.mrb[0].mxu0
    %278 = vmatprep.mubr.f32.mxu0 0.0
    %279 = vmatmul.mubr.f32.gmra.mrb[0].mxu0 %v207
    %v280 = vpop.f32.mrb[0].mxu0
    %v281 = vadd.f32 0.0, %v280
    %v282 = vpop.f32.mrb[0].mxu0
    %283 = vdwg.mxu0
    %285 = vrot.lane.b32.xlu0 %v281, 64
    %v286 = vpop.permute.xlu0 %285
    %v288 = vsel %vm154, %v276, %v286
    %v289 = vlaneseq
    %v290 = vshrl.u32 %v289, 7
    %v291 = vsub.s32 0, %v290
    %v292 = vrot.slane %v64, %v291
    %v293 = vadd.f32 %v288, %v292
    %v294 = vmax.f32 %v293, 0.0
    %vm295 = vcmp.ne.f32.partialorder %v293, %v293
    %v296 = vadd.f32 %v293, 0.0
    %v297 = vand.u32 2147483647, %v293
    %v298 = vsub.f32 0.0, %v297
    %v299 = vmul.f32 %v298, 1.442695
    %v300 = vpow.pop %v299
    %v301 = vadd.f32 %v300, 1.0
    %v302 = vlog2.pop %v301
    %v303 = vmul.f32 %v302, 0.6931472
    %v304 = vmul.f32 -0.5, %v300
    %v305 = vadd.f32 %v304, 1.0
    %v306 = vmul.f32 %v305, %v300
    %v307 = vand.u32 2147483647, %v300
    %vm308 = vcmp.lt.f32.partialorder %v307, 0.0004427343
    %v309 = vsel %vm308, %v306, %v303
    %v310 = vadd.f32 %v294, %v309
    %v311 = vsel %vm295, %v296, %v310
    %v312 = vlaneseq
    %v313 = vshrl.u32 %v312, 7
    %v314 = vsub.s32 0, %v313
    %v315 = vrot.slane %v276, %v314
    %s317 = sor.u32 256, 64
    %318 = vbcast.lane.b32.xlu0 %v315, %s317
    %v319 = vpop.permute.xlu0 %318
    %s321 = sor.u32 256, 72
    %322 = vbcast.lane.b32.xlu0 %v315, %s321
    %v323 = vpop.permute.xlu0 %322
    %v324 = vlaneseq
    %v325 = vshrl.u32 %v324, 7
    %v326 = vsub.s32 1, %v325
    %v327 = vrot.slane %v276, %v326
    %s329 = sor.u32 256, 64
    %330 = vbcast.lane.b32.xlu0 %v327, %s329
    %v331 = vpop.permute.xlu0 %330
    %s333 = sor.u32 256, 72
    %334 = vbcast.lane.b32.xlu0 %v327, %s333
    %v335 = vpop.permute.xlu0 %334
    %v336 = vlaneseq
    %v337 = vshrl.u32 %v336, 7
    %v338 = vsub.s32 2, %v337
    %v339 = vrot.slane %v276, %v338
    %s341 = sor.u32 256, 64
    %342 = vbcast.lane.b32.xlu0 %v339, %s341
    %v343 = vpop.permute.xlu0 %342
    %s345 = sor.u32 256, 72
    %346 = vbcast.lane.b32.xlu0 %v339, %s345
    %v347 = vpop.permute.xlu0 %346
    %v348 = vlaneseq
    %v349 = vshrl.u32 %v348, 7
    %v350 = vsub.s32 3, %v349
    %v351 = vrot.slane %v276, %v350
    %s353 = sor.u32 256, 64
    %354 = vbcast.lane.b32.xlu0 %v351, %s353
    %v355 = vpop.permute.xlu0 %354
    %s357 = sor.u32 256, 72
    %358 = vbcast.lane.b32.xlu0 %v351, %s357
    %v359 = vpop.permute.xlu0 %358
    %v360 = vlaneseq
    %v361 = vshrl.u32 %v360, 7
    %v362 = vsub.s32 4, %v361
    %v363 = vrot.slane %v276, %v362
    %s365 = sor.u32 256, 64
    %366 = vbcast.lane.b32.xlu0 %v363, %s365
    %v367 = vpop.permute.xlu0 %366
    %s369 = sor.u32 256, 72
    %370 = vbcast.lane.b32.xlu0 %v363, %s369
    %v371 = vpop.permute.xlu0 %370
    %v372 = vlaneseq
    %v373 = vshrl.u32 %v372, 7
    %v374 = vsub.s32 5, %v373
    %v375 = vrot.slane %v276, %v374
    %s377 = sor.u32 256, 64
    %378 = vbcast.lane.b32.xlu0 %v375, %s377
    %v379 = vpop.permute.xlu0 %378
    %s381 = sor.u32 256, 72
    %382 = vbcast.lane.b32.xlu0 %v375, %s381
    %v383 = vpop.permute.xlu0 %382
    %v384 = vlaneseq
    %v385 = vshrl.u32 %v384, 7
    %v386 = vsub.s32 6, %v385
    %v387 = vrot.slane %v276, %v386
    %s389 = sor.u32 256, 64
    %390 = vbcast.lane.b32.xlu0 %v387, %s389
    %v391 = vpop.permute.xlu0 %390
    %s393 = sor.u32 256, 72
    %394 = vbcast.lane.b32.xlu0 %v387, %s393
    %v395 = vpop.permute.xlu0 %394
    %v396 = vlaneseq
    %v397 = vshrl.u32 %v396, 7
    %v398 = vsub.s32 7, %v397
    %v399 = vrot.slane %v276, %v398
    %s401 = sor.u32 256, 64
    %402 = vbcast.lane.b32.xlu0 %v399, %s401
    %v403 = vpop.permute.xlu0 %402
    %s405 = sor.u32 256, 72
    %406 = vbcast.lane.b32.xlu0 %v399, %s405
    %v407 = vpop.permute.xlu0 %406
    %v408 = vlaneseq
    %v409 = vshrl.u32 %v408, 7
    %v410 = vsub.s32 0, %v409
    %v411 = vrot.slane %v281, %v410
    %s413 = sor.u32 256, 64
    %414 = vbcast.lane.b32.xlu0 %v411, %s413
    %v415 = vpop.permute.xlu0 %414
    %s417 = sor.u32 256, 72
    %418 = vbcast.lane.b32.xlu0 %v411, %s417
    %v419 = vpop.permute.xlu0 %418
    %v420 = vlaneseq
    %v421 = vshrl.u32 %v420, 7
    %v422 = vsub.s32 1, %v421
    %v423 = vrot.slane %v281, %v422
    %s425 = sor.u32 256, 64
    %426 = vbcast.lane.b32.xlu0 %v423, %s425
    %v427 = vpop.permute.xlu0 %426
    %s429 = sor.u32 256, 72
    %430 = vbcast.lane.b32.xlu0 %v423, %s429
    %v431 = vpop.permute.xlu0 %430
    %v432 = vlaneseq
    %v433 = vshrl.u32 %v432, 7
    %v434 = vsub.s32 2, %v433
    %v435 = vrot.slane %v281, %v434
    %s437 = sor.u32 256, 64
    %438 = vbcast.lane.b32.xlu0 %v435, %s437
    %v439 = vpop.permute.xlu0 %438
    %s441 = sor.u32 256, 72
    %442 = vbcast.lane.b32.xlu0 %v435, %s441
    %v443 = vpop.permute.xlu0 %442
    %v444 = vlaneseq
    %v445 = vshrl.u32 %v444, 7
    %v446 = vsub.s32 3, %v445
    %v447 = vrot.slane %v281, %v446
    %s449 = sor.u32 256, 64
    %450 = vbcast.lane.b32.xlu0 %v447, %s449
    %v451 = vpop.permute.xlu0 %450
    %s453 = sor.u32 256, 72
    %454 = vbcast.lane.b32.xlu0 %v447, %s453
    %v455 = vpop.permute.xlu0 %454
    %v456 = vlaneseq
    %v457 = vshrl.u32 %v456, 7
    %v458 = vsub.s32 4, %v457
    %v459 = vrot.slane %v281, %v458
    %s461 = sor.u32 256, 64
    %462 = vbcast.lane.b32.xlu0 %v459, %s461
    %v463 = vpop.permute.xlu0 %462
    %s465 = sor.u32 256, 72
    %466 = vbcast.lane.b32.xlu0 %v459, %s465
    %v467 = vpop.permute.xlu0 %466
    %v468 = vlaneseq
    %v469 = vshrl.u32 %v468, 7
    %v470 = vsub.s32 5, %v469
    %v471 = vrot.slane %v281, %v470
    %s473 = sor.u32 256, 64
    %474 = vbcast.lane.b32.xlu0 %v471, %s473
    %v475 = vpop.permute.xlu0 %474
    %s477 = sor.u32 256, 72
    %478 = vbcast.lane.b32.xlu0 %v471, %s477
    %v479 = vpop.permute.xlu0 %478
    %v480 = vlaneseq
    %v481 = vshrl.u32 %v480, 7
    %v482 = vsub.s32 6, %v481
    %v483 = vrot.slane %v281, %v482
    %s485 = sor.u32 256, 64
    %486 = vbcast.lane.b32.xlu0 %v483, %s485
    %v487 = vpop.permute.xlu0 %486
    %s489 = sor.u32 256, 72
    %490 = vbcast.lane.b32.xlu0 %v483, %s489
    %v491 = vpop.permute.xlu0 %490
    %v492 = vlaneseq
    %v493 = vshrl.u32 %v492, 7
    %v494 = vsub.s32 7, %v493
    %v495 = vrot.slane %v281, %v494
    %s497 = sor.u32 256, 64
    %498 = vbcast.lane.b32.xlu0 %v495, %s497
    %v499 = vpop.permute.xlu0 %498
    %s501 = sor.u32 256, 72
    %502 = vbcast.lane.b32.xlu0 %v495, %s501
    %v503 = vpop.permute.xlu0 %502
    %v504 = vsel %vm154, %v319, %v415
    %v505 = vsel %vm154, %v323, %v419
    %v506 = vsel %vm154, %v331, %v427
    %v507 = vsel %vm154, %v335, %v431
    %v508 = vsel %vm154, %v343, %v439
    %v509 = vsel %vm154, %v347, %v443
    %v510 = vsel %vm154, %v355, %v451
    %v511 = vsel %vm154, %v359, %v455
    %v512 = vsel %vm154, %v367, %v463
    %v513 = vsel %vm154, %v371, %v467
    %v514 = vsel %vm154, %v379, %v475
    %v515 = vsel %vm154, %v383, %v479
    %v516 = vsel %vm154, %v391, %v487
    %v517 = vsel %vm154, %v395, %v491
    %v518 = vsel %vm154, %v403, %v499
    %v519 = vsel %vm154, %v407, %v503
    %s521 = sor.u32 256, 80
    %522 = vbcast.lane.b32.xlu0 %v315, %s521
    %v523 = vpop.permute.xlu0 %522
    %s525 = sor.u32 256, 88
    %526 = vbcast.lane.b32.xlu0 %v315, %s525
    %v527 = vpop.permute.xlu0 %526
    %s529 = sor.u32 256, 80
    %530 = vbcast.lane.b32.xlu0 %v327, %s529
    %v531 = vpop.permute.xlu0 %530
    %s533 = sor.u32 256, 88
    %534 = vbcast.lane.b32.xlu0 %v327, %s533
    %v535 = vpop.permute.xlu0 %534
    %s537 = sor.u32 256, 80
    %538 = vbcast.lane.b32.xlu0 %v339, %s537
    %v539 = vpop.permute.xlu0 %538
    %s541 = sor.u32 256, 88
    %542 = vbcast.lane.b32.xlu0 %v339, %s541
    %v543 = vpop.permute.xlu0 %542
    %s545 = sor.u32 256, 80
    %546 = vbcast.lane.b32.xlu0 %v351, %s545
    %v547 = vpop.permute.xlu0 %546
    %s549 = sor.u32 256, 88
    %550 = vbcast.lane.b32.xlu0 %v351, %s549
    %v551 = vpop.permute.xlu0 %550
    %s553 = sor.u32 256, 80
    %554 = vbcast.lane.b32.xlu0 %v363, %s553
    %v555 = vpop.permute.xlu0 %554
    %s557 = sor.u32 256, 88
    %558 = vbcast.lane.b32.xlu0 %v363, %s557
    %v559 = vpop.permute.xlu0 %558
    %s561 = sor.u32 256, 80
    %562 = vbcast.lane.b32.xlu0 %v375, %s561
    %v563 = vpop.permute.xlu0 %562
    %s565 = sor.u32 256, 88
    %566 = vbcast.lane.b32.xlu0 %v375, %s565
    %v567 = vpop.permute.xlu0 %566
    %s569 = sor.u32 256, 80
    %570 = vbcast.lane.b32.xlu0 %v387, %s569
    %v571 = vpop.permute.xlu0 %570
    %s573 = sor.u32 256, 88
    %574 = vbcast.lane.b32.xlu0 %v387, %s573
    %v575 = vpop.permute.xlu0 %574
    %s577 = sor.u32 256, 80
    %578 = vbcast.lane.b32.xlu0 %v399, %s577
    %v579 = vpop.permute.xlu0 %578
    %s581 = sor.u32 256, 88
    %582 = vbcast.lane.b32.xlu0 %v399, %s581
    %v583 = vpop.permute.xlu0 %582
    %s585 = sor.u32 256, 80
    %586 = vbcast.lane.b32.xlu0 %v411, %s585
    %v587 = vpop.permute.xlu0 %586
    %s589 = sor.u32 256, 88
    %590 = vbcast.lane.b32.xlu0 %v411, %s589
    %v591 = vpop.permute.xlu0 %590
    %s593 = sor.u32 256, 80
    %594 = vbcast.lane.b32.xlu0 %v423, %s593
    %v595 = vpop.permute.xlu0 %594
    %s597 = sor.u32 256, 88
    %598 = vbcast.lane.b32.xlu0 %v423, %s597
    %v599 = vpop.permute.xlu0 %598
    %s601 = sor.u32 256, 80
    %602 = vbcast.lane.b32.xlu0 %v435, %s601
    %v603 = vpop.permute.xlu0 %602
    %s605 = sor.u32 256, 88
    %606 = vbcast.lane.b32.xlu0 %v435, %s605
    %v607 = vpop.permute.xlu0 %606
    %s609 = sor.u32 256, 80
    %610 = vbcast.lane.b32.xlu0 %v447, %s609
    %v611 = vpop.permute.xlu0 %610
    %s613 = sor.u32 256, 88
    %614 = vbcast.lane.b32.xlu0 %v447, %s613
    %v615 = vpop.permute.xlu0 %614
    %s617 = sor.u32 256, 80
    %618 = vbcast.lane.b32.xlu0 %v459, %s617
    %v619 = vpop.permute.xlu0 %618
    %s621 = sor.u32 256, 88
    %622 = vbcast.lane.b32.xlu0 %v459, %s621
    %v623 = vpop.permute.xlu0 %622
    %s625 = sor.u32 256, 80
    %626 = vbcast.lane.b32.xlu0 %v471, %s625
    %v627 = vpop.permute.xlu0 %626
    %s629 = sor.u32 256, 88
    %630 = vbcast.lane.b32.xlu0 %v471, %s629
    %v631 = vpop.permute.xlu0 %630
    %s633 = sor.u32 256, 80
    %634 = vbcast.lane.b32.xlu0 %v483, %s633
    %v635 = vpop.permute.xlu0 %634
    %s637 = sor.u32 256, 88
    %638 = vbcast.lane.b32.xlu0 %v483, %s637
    %v639 = vpop.permute.xlu0 %638
    %s641 = sor.u32 256, 80
    %642 = vbcast.lane.b32.xlu0 %v495, %s641
    %v643 = vpop.permute.xlu0 %642
    %s645 = sor.u32 256, 88
    %646 = vbcast.lane.b32.xlu0 %v495, %s645
    %v647 = vpop.permute.xlu0 %646
    %v648 = vsel %vm154, %v523, %v587
    %v649 = vsel %vm154, %v527, %v591
    %v650 = vsel %vm154, %v531, %v595
    %v651 = vsel %vm154, %v535, %v599
    %v652 = vsel %vm154, %v539, %v603
    %v653 = vsel %vm154, %v543, %v607
    %v654 = vsel %vm154, %v547, %v611
    %v655 = vsel %vm154, %v551, %v615
    %v656 = vsel %vm154, %v555, %v619
    %v657 = vsel %vm154, %v559, %v623
    %v658 = vsel %vm154, %v563, %v627
    %v659 = vsel %vm154, %v567, %v631
    %v660 = vsel %vm154, %v571, %v635
    %v661 = vsel %vm154, %v575, %v639
    %v662 = vsel %vm154, %v579, %v643
    %v663 = vsel %vm154, %v583, %v647
    %v665 = vcombine.high %v311, %v311
    %v667 = vunpack.c.l.s4 1966171168
    %v668 = vunpack.c.0.s8 %v667
    %v669 = vlaneseq
    %v670 = vshrl.u32 %v669, 7
    %v671 = vsub.s32 %v668, %v670
    %v672 = vrot.slane %v311, %v671
    %v674 = vunpack.c.l.s4 1966171168
    %v675 = vunpack.c.0.s8 %v674
    %v676 = vlaneseq
    %v677 = vshrl.u32 %v676, 7
    %v678 = vsub.s32 %v675, %v677
    %v679 = vrot.slane %v665, %v678
    %v680 = vcombine.high %v672, %v672
    %v681 = vcombine.high %v679, %v679
    %v683 = vunpack.c.l.s4 1966171168
    %v684 = vunpack.c.0.s8 %v683
    %v685 = vlaneseq
    %v686 = vshrl.u32 %v685, 7
    %v687 = vsub.s32 %v684, %v686
    %v688 = vrot.slane %v672, %v687
    %v690 = vunpack.c.l.s4 1966171168
    %v691 = vunpack.c.0.s8 %v690
    %v692 = vlaneseq
    %v693 = vshrl.u32 %v692, 7
    %v694 = vsub.s32 %v691, %v693
    %v695 = vrot.slane %v679, %v694
    %v697 = vunpack.c.l.s4 1966171168
    %v698 = vunpack.c.0.s8 %v697
    %v699 = vlaneseq
    %v700 = vshrl.u32 %v699, 7
    %v701 = vsub.s32 %v698, %v700
    %v702 = vrot.slane %v680, %v701
    %v704 = vunpack.c.l.s4 1966171168
    %v705 = vunpack.c.0.s8 %v704
    %v706 = vlaneseq
    %v707 = vshrl.u32 %v706, 7
    %v708 = vsub.s32 %v705, %v707
    %v709 = vrot.slane %v681, %v708
    %v710 = vcombine.high %v688, %v688
    %v711 = vcombine.high %v695, %v695
    %v712 = vcombine.high %v702, %v702
    %v713 = vcombine.high %v709, %v709
    %v714 = vlaneseq
    %v715 = vshrl.u32 %v714, 7
    %v716 = vsub.s32 0, %v715
    %v717 = vrot.slane %v688, %v716
    %v718 = vlaneseq
    %v719 = vshrl.u32 %v718, 7
    %v720 = vsub.s32 0, %v719
    %v721 = vrot.slane %v702, %v720
    %v722 = vlaneseq
    %v723 = vshrl.u32 %v722, 7
    %v724 = vsub.s32 0, %v723
    %v725 = vrot.slane %v710, %v724
    %v726 = vlaneseq
    %v727 = vshrl.u32 %v726, 7
    %v728 = vsub.s32 0, %v727
    %v729 = vrot.slane %v712, %v728
    %v730 = vlaneseq
    %v731 = vshrl.u32 %v730, 7
    %v732 = vsub.s32 0, %v731
    %v733 = vrot.slane %v695, %v732
    %v734 = vlaneseq
    %v735 = vshrl.u32 %v734, 7
    %v736 = vsub.s32 0, %v735
    %v737 = vrot.slane %v709, %v736
    %v738 = vlaneseq
    %v739 = vshrl.u32 %v738, 7
    %v740 = vsub.s32 0, %v739
    %v741 = vrot.slane %v711, %v740
    %v742 = vlaneseq
    %v743 = vshrl.u32 %v742, 7
    %v744 = vsub.s32 0, %v743
    %v745 = vrot.slane %v713, %v744
    %v754 = vmul.f32 %v717, %v60
    %v755 = vmul.f32 %v717, %v61
    %v756 = vmul.f32 %v721, %v60
    %v757 = vmul.f32 %v721, %v61
    %v758 = vmul.f32 %v725, %v60
    %v759 = vmul.f32 %v725, %v61
    %v760 = vmul.f32 %v729, %v60
    %v761 = vmul.f32 %v729, %v61
    %v762 = vmul.f32 %v733, %v60
    %v763 = vmul.f32 %v733, %v61
    %v764 = vmul.f32 %v737, %v60
    %v765 = vmul.f32 %v737, %v61
    %v766 = vmul.f32 %v741, %v60
    %v767 = vmul.f32 %v741, %v61
    %v768 = vmul.f32 %v745, %v60
    %v769 = vmul.f32 %v745, %v61
    %v770 = vmul.f32 %v754, 1.442695
    %v771 = vpow.pop %v770
    %v772 = vmul.f32 %v755, 1.442695
    %v773 = vpow.pop %v772
    %v774 = vmul.f32 %v756, 1.442695
    %v775 = vpow.pop %v774
    %v776 = vmul.f32 %v757, 1.442695
    %v777 = vpow.pop %v776
    %v778 = vmul.f32 %v758, 1.442695
    %v779 = vpow.pop %v778
    %v780 = vmul.f32 %v759, 1.442695
    %v781 = vpow.pop %v780
    %v782 = vmul.f32 %v760, 1.442695
    %v783 = vpow.pop %v782
    %v784 = vmul.f32 %v761, 1.442695
    %v785 = vpow.pop %v784
    %v786 = vmul.f32 %v762, 1.442695
    %v787 = vpow.pop %v786
    %v788 = vmul.f32 %v763, 1.442695
    %v789 = vpow.pop %v788
    %v790 = vmul.f32 %v764, 1.442695
    %v791 = vpow.pop %v790
    %v792 = vmul.f32 %v765, 1.442695
    %v793 = vpow.pop %v792
    %v794 = vmul.f32 %v766, 1.442695
    %v795 = vpow.pop %v794
    %v796 = vmul.f32 %v767, 1.442695
    %v797 = vpow.pop %v796
    %v798 = vmul.f32 %v768, 1.442695
    %v799 = vpow.pop %v798
    %v800 = vmul.f32 %v769, 1.442695
    %v801 = vpow.pop %v800
    %v802 = vmul.f32 %v311, %v201
    %v804 = vcombine.high %v802, %v802
    %v806 = vunpack.c.l.s4 1966171168
    %v807 = vunpack.c.0.s8 %v806
    %v808 = vlaneseq
    %v809 = vshrl.u32 %v808, 7
    %v810 = vsub.s32 %v807, %v809
    %v811 = vrot.slane %v802, %v810
    %v813 = vunpack.c.l.s4 1966171168
    %v814 = vunpack.c.0.s8 %v813
    %v815 = vlaneseq
    %v816 = vshrl.u32 %v815, 7
    %v817 = vsub.s32 %v814, %v816
    %v818 = vrot.slane %v804, %v817
    %v819 = vcombine.high %v811, %v811
    %v820 = vcombine.high %v818, %v818
    %v822 = vunpack.c.l.s4 1966171168
    %v823 = vunpack.c.0.s8 %v822
    %v824 = vlaneseq
    %v825 = vshrl.u32 %v824, 7
    %v826 = vsub.s32 %v823, %v825
    %v827 = vrot.slane %v811, %v826
    %v829 = vunpack.c.l.s4 1966171168
    %v830 = vunpack.c.0.s8 %v829
    %v831 = vlaneseq
    %v832 = vshrl.u32 %v831, 7
    %v833 = vsub.s32 %v830, %v832
    %v834 = vrot.slane %v818, %v833
    %v836 = vunpack.c.l.s4 1966171168
    %v837 = vunpack.c.0.s8 %v836
    %v838 = vlaneseq
    %v839 = vshrl.u32 %v838, 7
    %v840 = vsub.s32 %v837, %v839
    %v841 = vrot.slane %v819, %v840
    %v843 = vunpack.c.l.s4 1966171168
    %v844 = vunpack.c.0.s8 %v843
    %v845 = vlaneseq
    %v846 = vshrl.u32 %v845, 7
    %v847 = vsub.s32 %v844, %v846
    %v848 = vrot.slane %v820, %v847
    %v849 = vcombine.high %v827, %v827
    %v850 = vcombine.high %v834, %v834
    %v851 = vcombine.high %v841, %v841
    %v852 = vcombine.high %v848, %v848
    %v853 = vlaneseq
    %v854 = vshrl.u32 %v853, 7
    %v855 = vsub.s32 0, %v854
    %v856 = vrot.slane %v827, %v855
    %v857 = vlaneseq
    %v858 = vshrl.u32 %v857, 7
    %v859 = vsub.s32 0, %v858
    %v860 = vrot.slane %v841, %v859
    %v861 = vlaneseq
    %v862 = vshrl.u32 %v861, 7
    %v863 = vsub.s32 0, %v862
    %v864 = vrot.slane %v849, %v863
    %v865 = vlaneseq
    %v866 = vshrl.u32 %v865, 7
    %v867 = vsub.s32 0, %v866
    %v868 = vrot.slane %v851, %v867
    %v869 = vlaneseq
    %v870 = vshrl.u32 %v869, 7
    %v871 = vsub.s32 0, %v870
    %v872 = vrot.slane %v834, %v871
    %v873 = vlaneseq
    %v874 = vshrl.u32 %v873, 7
    %v875 = vsub.s32 0, %v874
    %v876 = vrot.slane %v848, %v875
    %v877 = vlaneseq
    %v878 = vshrl.u32 %v877, 7
    %v879 = vsub.s32 0, %v878
    %v880 = vrot.slane %v850, %v879
    %v881 = vlaneseq
    %v882 = vshrl.u32 %v881, 7
    %v883 = vsub.s32 0, %v882
    %v884 = vrot.slane %v852, %v883
    %v893 = vmul.f32 %v856, %v504
    %v894 = vmul.f32 %v856, %v505
    %v895 = vmul.f32 %v860, %v506
    %v896 = vmul.f32 %v860, %v507
    %v897 = vmul.f32 %v864, %v508
    %v898 = vmul.f32 %v864, %v509
    %v899 = vmul.f32 %v868, %v510
    %v900 = vmul.f32 %v868, %v511
    %v901 = vmul.f32 %v872, %v512
    %v902 = vmul.f32 %v872, %v513
    %v903 = vmul.f32 %v876, %v514
    %v904 = vmul.f32 %v876, %v515
    %v905 = vmul.f32 %v880, %v516
    %v906 = vmul.f32 %v880, %v517
    %v907 = vmul.f32 %v884, %v518
    %v908 = vmul.f32 %v884, %v519
    %v909 = vmul.f32 %v771, 0.0
    %v910 = vmul.f32 %v773, 0.0
    %v911 = vadd.f32 %v909, %v893
    %v912 = vadd.f32 %v910, %v894
    %v913 = vmul.f32 %v911, %v648
    %v914 = vmul.f32 %v912, %v649
    %v915 = vadd.f32 %v913, %v914
    %v916 = vrot.slane %v915, 4
    %v917 = vadd.f32 %v915, %v916
    %v918 = vrot.slane %v917, 2
    %v919 = vadd.f32 %v917, %v918
    %v920 = vrot.slane %v919, 1
    %v921 = vadd.f32 %v919, %v920
    %v922 = vmul.f32 %v775, %v911
    %v923 = vmul.f32 %v777, %v912
    %v924 = vadd.f32 %v922, %v895
    %v925 = vadd.f32 %v923, %v896
    %v926 = vmul.f32 %v924, %v650
    %v927 = vmul.f32 %v925, %v651
    %v928 = vadd.f32 %v926, %v927
    %v929 = vrot.slane %v928, 4
    %v930 = vadd.f32 %v928, %v929
    %v931 = vrot.slane %v930, 2
    %v932 = vadd.f32 %v930, %v931
    %v933 = vrot.slane %v932, 1
    %v934 = vadd.f32 %v932, %v933
    %v935 = vmul.f32 %v779, %v924
    %v936 = vmul.f32 %v781, %v925
    %v937 = vadd.f32 %v935, %v897
    %v938 = vadd.f32 %v936, %v898
    %v939 = vmul.f32 %v937, %v652
    %v940 = vmul.f32 %v938, %v653
    %v941 = vadd.f32 %v939, %v940
    %v942 = vrot.slane %v941, 4
    %v943 = vadd.f32 %v941, %v942
    %v944 = vrot.slane %v943, 2
    %v945 = vadd.f32 %v943, %v944
    %v946 = vrot.slane %v945, 1
    %v947 = vadd.f32 %v945, %v946
    %v948 = vmul.f32 %v783, %v937
    %v949 = vmul.f32 %v785, %v938
    %v950 = vadd.f32 %v948, %v899
    %v951 = vadd.f32 %v949, %v900
    %v952 = vmul.f32 %v950, %v654
    %v953 = vmul.f32 %v951, %v655
    %v954 = vadd.f32 %v952, %v953
    %v955 = vrot.slane %v954, 4
    %v956 = vadd.f32 %v954, %v955
    %v957 = vrot.slane %v956, 2
    %v958 = vadd.f32 %v956, %v957
    %v959 = vrot.slane %v958, 1
    %v960 = vadd.f32 %v958, %v959
    %v961 = vmul.f32 %v787, %v950
    %v962 = vmul.f32 %v789, %v951
    %v963 = vadd.f32 %v961, %v901
    %v964 = vadd.f32 %v962, %v902
    %v965 = vmul.f32 %v963, %v656
    %v966 = vmul.f32 %v964, %v657
    %v967 = vadd.f32 %v965, %v966
    %v968 = vrot.slane %v967, 4
    %v969 = vadd.f32 %v967, %v968
    %v970 = vrot.slane %v969, 2
    %v971 = vadd.f32 %v969, %v970
    %v972 = vrot.slane %v971, 1
    %v973 = vadd.f32 %v971, %v972
    %v974 = vmul.f32 %v791, %v963
    %v975 = vmul.f32 %v793, %v964
    %v976 = vadd.f32 %v974, %v903
    %v977 = vadd.f32 %v975, %v904
    %v978 = vmul.f32 %v976, %v658
    %v979 = vmul.f32 %v977, %v659
    %v980 = vadd.f32 %v978, %v979
    %v981 = vrot.slane %v980, 4
    %v982 = vadd.f32 %v980, %v981
    %v983 = vrot.slane %v982, 2
    %v984 = vadd.f32 %v982, %v983
    %v985 = vrot.slane %v984, 1
    %v986 = vadd.f32 %v984, %v985
    %v987 = vmul.f32 %v795, %v976
    %v988 = vmul.f32 %v797, %v977
    %v989 = vadd.f32 %v987, %v905
    %v990 = vadd.f32 %v988, %v906
    %v991 = vmul.f32 %v989, %v660
    %v992 = vmul.f32 %v990, %v661
    %v993 = vadd.f32 %v991, %v992
    %v994 = vrot.slane %v993, 4
    %v995 = vadd.f32 %v993, %v994
    %v996 = vrot.slane %v995, 2
    %v997 = vadd.f32 %v995, %v996
    %v998 = vrot.slane %v997, 1
    %v999 = vadd.f32 %v997, %v998
    %v1000 = vmul.f32 %v799, %v989
    %v1001 = vmul.f32 %v801, %v990
    %v1002 = vadd.f32 %v1000, %v907
    %v1003 = vadd.f32 %v1001, %v908
    %v1004 = vmul.f32 %v1002, %v662
    %v1005 = vmul.f32 %v1003, %v663
    %v1006 = vadd.f32 %v1004, %v1005
    %v1007 = vrot.slane %v1006, 4
    %v1008 = vadd.f32 %v1006, %v1007
    %v1009 = vrot.slane %v1008, 2
    %v1010 = vadd.f32 %v1008, %v1009
    %v1011 = vrot.slane %v1010, 1
    %v1012 = vadd.f32 %v1010, %v1011
    %vm1013 = vcmask 1040384
    %v1014 = vsel %vm1013, %v921, %v934
    %vm1015 = vcmask 1041408
    %v1016 = vsel %vm1015, %v1014, %v947
    %vm1017 = vcmask 1042432
    %v1018 = vsel %vm1017, %v1016, %v960
    %vm1019 = vcmask 1043456
    %v1020 = vsel %vm1019, %v1018, %v973
    %vm1021 = vcmask 1044480
    %v1022 = vsel %vm1021, %v1020, %v986
    %vm1023 = vcmask 1045504
    %v1024 = vsel %vm1023, %v1022, %v999
    %vm1025 = vcmask 1046528
    %v1026 = vsel %vm1025, %v1024, %v1012
    %v1027 = vlaneseq
    %v1028 = vshrl.u32 %v1027, 7
    %v1029 = vsub.s32 0, %v1028
    %v1030 = vrot.slane %v65, %v1029
    %v1031 = vmul.f32 %v1030, %v201
    %v1032 = vadd.f32 %v1026, %v1031
    %1034 = vrot.lane.b32.xlu0 %v1032, 64
    %v1035 = vpop.permute.xlu0 %1034
    %v1037 = vxor.u32 %v142, 2147483648
    %v1038 = vxor.u32 %v147, 2147483648
    %v1039 = vmul.f32 %v1037, 1.442695
    %v1040 = vpow.pop %v1039
    %v1041 = vmul.f32 %v1038, 1.442695
    %v1042 = vpow.pop %v1041
    %v1043 = vadd.f32 %v1040, 1.0
    %v1044 = vadd.f32 %v1042, 1.0
    %v1045 = vrcp.pop %v1043
    %v1046 = vmul.f32 1.0, %v1045
    %v1047 = vrcp.pop %v1044
    %v1048 = vmul.f32 1.0, %v1047
    %v1049 = vmul.f32 %v142, %v1046
    %v1050 = vmul.f32 %v147, %v1048
    %1053 = vrot.lane.b32.xlu0 %v1049, 64
    %v1054 = vpop.permute.xlu0 %1053
    %1055 = vrot.lane.b32.xlu0 %v1050, 64
    %v1056 = vpop.permute.xlu0 %1055
    %v1059 = vmul.f32 %v1032, %v1054
    %v1060 = vmul.f32 %v1035, %v1056
    %v1062 = vsel %vm154, %v1059, 0
    %v1065 = vsel %vm154, %v1060, 0
    %1067 = vmatprep.subr.mxu0 0.0
    %1068 = vmatpush1.msra.mxu0 %v52
    %1069 = vmatprep.subr.mxu0 0.0
    %1070 = vmatpush1.msra.mxu0 %v53
    %1071 = vmatprep.subr.mxu0 0.0
    %1072 = vmatpush1.msra.mxu0 %v54
    %1073 = vmatprep.subr.mxu0 0.0
    %1074 = vmatpush1.msra.mxu0 %v55
    %1075 = vmatprep.subr.mxu0 0.0
    %1076 = vmatpush1.msra.mxu0 %v56
    %1077 = vmatprep.subr.mxu0 0.0
    %1078 = vmatpush1.msra.mxu0 %v57
    %1079 = vmatprep.subr.mxu0 0.0
    %1080 = vmatpush1.msra.mxu0 %v58
    %1081 = vmatprep.subr.mxu0 0.0
    %1082 = vmatpush1.msra.mxu0 %v59
    %1083 = vmatprep.subr.mxu0 0.0
    %1084 = vmatpush1.msra.mxu0 0.0
    %1085 = vmatprep.subr.mxu0 0.0
    %1086 = vmatpush1.msra.mxu0 0.0
    %1087 = vmatprep.subr.mxu0 0.0
    %1088 = vmatpush1.msra.mxu0 0.0
    %1089 = vmatprep.subr.mxu0 0.0
    %1090 = vmatpush1.msra.mxu0 0.0
    %1091 = vmatprep.subr.mxu0 0.0
    %1092 = vmatpush1.msra.mxu0 0.0
    %1093 = vmatprep.subr.mxu0 0.0
    %1094 = vmatpush1.msra.mxu0 0.0
    %1095 = vmatprep.subr.mxu0 0.0
    %1096 = vmatpush1.msra.mxu0 0.0
    %1097 = vmatprep.subr.mxu0 0.0
    %1098 = vmatpush1.msra.mxu0 0.0
    %1099 = vmatprep.subr.mxu0 0.0
    %1100 = vmatpush1.msra.mxu0 0.0
    %1101 = vmatprep.subr.mxu0 0.0
    %1102 = vmatpush1.msra.mxu0 0.0
    %1103 = vmatprep.subr.mxu0 0.0
    %1104 = vmatpush1.msra.mxu0 0.0
    %1105 = vmatprep.subr.mxu0 0.0
    %1106 = vmatpush1.msra.mxu0 0.0
    %1107 = vmatprep.subr.mxu0 0.0
    %1108 = vmatpush1.msra.mxu0 0.0
    %1109 = vmatprep.subr.mxu0 0.0
    %1110 = vmatpush1.msra.mxu0 0.0
    %1111 = vmatprep.subr.mxu0 0.0
    %1112 = vmatpush1.msra.mxu0 0.0
    %1113 = vmatprep.subr.mxu0 0.0
    %1114 = vmatpush1.msra.mxu0 0.0
    %1115 = vmatprep.subr.mxu0 0.0
    %1116 = vmatpush1.msra.mxu0 0.0
    %1117 = vmatprep.subr.mxu0 0.0
    %1118 = vmatpush1.msra.mxu0 0.0
    %1119 = vmatprep.subr.mxu0 0.0
    %1120 = vmatpush1.msra.mxu0 0.0
    %1121 = vmatprep.subr.mxu0 0.0
    %1122 = vmatpush1.msra.mxu0 0.0
    %1123 = vmatprep.subr.mxu0 0.0
    %1124 = vmatpush1.msra.mxu0 0.0
    %1125 = vmatprep.subr.mxu0 0.0
    %1126 = vmatpush1.msra.mxu0 0.0
    %1127 = vmatprep.subr.mxu0 0.0
    %1128 = vmatpush1.msra.mxu0 0.0
    %1129 = vmatprep.subr.mxu0 0.0
    %1130 = vmatpush1.msra.mxu0 0.0
    %1131 = vmatprep.mubr.f32.mxu0 0.0
    %1132 = vmatmul.mubr.f32.gmra.mrb[0].mxu0 %v1062
    %v1133 = vpop.f32.mrb[0].mxu0
    %v1134 = vadd.f32 0.0, %v1133
    %v1135 = vpop.f32.mrb[0].mxu0
    %1136 = vmatprep.mubr.f32.mxu0 0.0
    %1137 = vmatmul.mubr.f32.gmra.mrb[0].mxu0 %v1065
    %v1138 = vpop.f32.mrb[0].mxu0
    %v1139 = vadd.f32 0.0, %v1138
    %v1140 = vpop.f32.mrb[0].mxu0
    %1141 = vdwg.mxu0
    %1142 = vst [vmem:[#allocation7] sm:$0xff] %v1134
    %1143 = vst [vmem:[#allocation7 + $0x8] sm:$0xff] %v1139
    // Predicated region
    $region18: #{tpu_custom_call.1} parent=1 // pred_check
      _
    $region19: #{tpu_custom_call.1} parent=1 // pred_check_branch
      %1145 = sbr.rel (0) target = $region21
    $region20: #{tpu_custom_call.1} parent=1 // pred_region
      %s1147 = ssub.s32 256, 256
      %1148 = vsyncadd [#allocation4], %s1147
      %s1149 = sshll.u32 [#allocation7], 4
      %s1150 = int_to_ptr.vmem [resolvable:$true] %s1149
      %1155 = dma.vmem_to_hbm [thread:$0]  %s1150, 256, %s2, [#allocation4], 128, 128, 8
    $region21: #{tpu_custom_call.1} parent=1 // pred_fallthru
      _
    // Predicated region
    $region22: #{tpu_custom_call.1} parent=1 // pred_check
      _
    $region23: #{tpu_custom_call.1} parent=1 // pred_check_branch
      %1157 = sbr.rel (0) target = $region25
    $region24: #{tpu_custom_call.1} parent=1 // pred_region
      %1158 = dma.done [#allocation4], 256
    $region25: #{tpu_custom_call.1} parent=1 // pred_fallthru
      _
    %1159 = vsyncpa [#allocation3], 1
    %1160 = vsyncpa [#allocation6], 1
    %1161 = vsyncpa [#allocation4], 1

</llo_original>
